<compile_context>
chip_gen: v5e
topology: v5e:2x2
jax: 0.10.0
libtpu: 0.0.40
codegen_flags: <defaults>
</compile_context>

<pallas_src>
import functools
import math

import jax
import jax.numpy as jnp
from jax.experimental import pallas as pl
from jax.experimental.pallas import tpu as pltpu


def _round_up(x, m):
    return (x + m - 1) // m * m


# --------------------------------------------------------------------------
# Prologue kernel: h = x @ W, h1 = h @ a1 (N,1), h2t = (h @ a2)^T (1,N)
# --------------------------------------------------------------------------
def _proj_kernel(x_ref, w_ref, a1_ref, a2_ref, h_ref, h1_ref, h2t_ref):
    # bf16 MXU matmul, f32 accumulation.
    h = jnp.dot(x_ref[...], w_ref[...], preferred_element_type=jnp.float32)
    h_ref[...] = h.astype(jnp.bfloat16)

    # Query-side projection: VPU multiply + lane reduce (f32).
    h1_ref[...] = jnp.sum(h * a1_ref[...], axis=-1, keepdims=True)

    # Key-side projection emitted directly in transposed (1, tile) layout so
    # the attention loop never pays a transpose.
    h2t_ref[...] = jax.lax.dot_general(
        a2_ref[...], h, (((1,), (1,)), ((), ())),
        preferred_element_type=jnp.float32)


# --------------------------------------------------------------------------
# Attention kernel: streaming masked softmax + att @ h + ELU
# --------------------------------------------------------------------------
def _attn_kernel(adj_ref, hk_ref, h1_ref, h2t_ref, bias_ref, out_ref,
                 m_scr, l_scr, *, alpha, block_n, resident, has_pad):
    k = pl.program_id(1)

    @pl.when(k == 0)
    def _():
        m_scr[...] = jnp.full_like(m_scr, -jnp.inf)
        l_scr[...] = jnp.zeros_like(l_scr)
        out_ref[...] = jnp.zeros_like(out_ref)   # output block IS the accumulator

    col0 = pl.multiple_of(k * block_n, block_n)

    # e = leakyrelu(h1 + h2^T) for this (row-tile, col-tile) block, f32
    # (kept f32 everywhere elementwise: no bf16 VPU on v5e).
    if resident:
        h2 = h2t_ref[:, pl.ds(col0, block_n)]
    else:
        h2 = h2t_ref[...]
    e = h1_ref[...] + h2                         # (tm,1)+(1,tn) -> (tm,tn)
    e = jnp.where(e > 0.0, e, alpha * e)         # LeakyReLU (VPU)

    # Zero-mask non-edges: matches the module's torch.where(adj > 0, e, zeros).
    s = jnp.where(adj_ref[...] != 0, e, 0.0)

    # Padded key columns must carry no softmax mass: one resident-slab add
    # (0 on valid cols, -1e30 on padded), emitted only if padding exists.
    if has_pad:
        if resident:
            s = s + bias_ref[:, pl.ds(col0, block_n)]
        else:
            s = s + bias_ref[...]

    # Online softmax update.
    m_prev = m_scr[...]
    m_new = jnp.maximum(m_prev, jnp.max(s, axis=-1, keepdims=True))
    corr = jnp.exp(m_prev - m_new)
    p = jnp.exp(s - m_new)
    l_scr[...] = corr * l_scr[...] + jnp.sum(p, axis=-1, keepdims=True)

    if resident:
        hk = hk_ref[pl.ds(col0, block_n), :]     # slice VMEM-resident keys
    else:
        hk = hk_ref[...]
    out_ref[...] = corr * out_ref[...] + jnp.dot(
        p.astype(jnp.bfloat16), hk, preferred_element_type=jnp.float32)
    m_scr[...] = m_new

    @pl.when(k == pl.num_programs(1) - 1)
    def _():
        # TODO(synk): attention-weight dropout skipped (eval mode).
        h_prime = out_ref[...] / l_scr[...]      # exact divide, epilogue-only
        # concat=True -> ELU; single lane-dense f32 store per row tile.
        out_ref[...] = jnp.where(h_prime > 0.0, h_prime,
                                 jnp.exp(h_prime) - 1.0)


# --------------------------------------------------------------------------
# Wrapper
# --------------------------------------------------------------------------
def gat_forward(x, adj, W, a, *, alpha, tm=256, tn=512):
    """Pallas GAT layer forward (concat=True, eval-mode dropout)."""
    N, f_in = x.shape
    f_out = W.shape[1]
    assert adj.shape == (N, N)
    assert a.shape == (2 * f_out, 1)

    # Lane-dense feature dim.
    f_pad = _round_up(max(f_out, 128), 128)

    # Decoupled row (query) / column (key) tiles; force >=2 row tiles when the
    # graph allows it so both v7x TensorCores get work.
    n_base = _round_up(N, 128)
    tm = _round_up(min(int(tm), n_base), 128)
    if n_base >= 256:
        tm = min(tm, (n_base // 2) // 128 * 128)
    tm = max(tm, 128)
    tn = max(128, _round_up(min(int(tn), n_base), 128))
    n_pad = _round_up(N, math.lcm(tm, tn))
    n_row, n_col = n_pad // tm, n_pad // tn

    # Keep the key-side operands (h, h2t, pad-bias) fully resident in VMEM
    # when h comfortably fits (budgeted for possible double-buffering);
    # otherwise fall back to streaming (tn, f_pad) key blocks per step.
    h_bytes = n_pad * f_pad * 2  # bf16
    resident = h_bytes <= 12 * 1024 * 1024

    # VMEM budget with headroom; cap at 48 MiB (safe on v7x's 64 MiB per TC).
    est = (2 * tm * tn                                   # adj int8 (x2 bufs)
           + 2 * (h_bytes if resident else tn * f_pad * 2)
           + 2 * tm * 128 * 4                            # h1 block (lane-padded)
           + 2 * 2 * 8 * (n_pad if resident else tn) * 4  # h2t + bias slabs
           + 2 * tm * f_pad * 4                          # output accumulator
           + 2 * tm * 128 * 4)                           # m/l scratch
    vmem_limit = int(min(48 * 1024 * 1024, max(32 * 1024 * 1024, 2 * est)))

    # Pack / pad inputs. adj ships as int8 (edge mask); bf16 casts of x/W are
    # one-time parameter casts.
    x_p = jnp.zeros((n_pad, f_in), jnp.bfloat16).at[:N].set(
        x.astype(jnp.bfloat16))
    w_p = jnp.zeros((f_in, f_pad), jnp.bfloat16).at[:, :f_out].set(
        W.astype(jnp.bfloat16))
    a1 = jnp.zeros((1, f_pad), jnp.float32).at[:, :f_out].set(
        a[:f_out, 0].astype(jnp.float32)[None, :])
    a2 = jnp.zeros((1, f_pad), jnp.float32).at[:, :f_out].set(
        a[f_out:, 0].astype(jnp.float32)[None, :])
    adj_i8 = jnp.zeros((n_pad, n_pad), jnp.int8).at[:N, :N].set(
        (adj > 0).astype(jnp.int8))
    pad_bias = jnp.where(jnp.arange(n_pad) < N, 0.0,
                         -1e30).astype(jnp.float32)[None, :]   # (1, n_pad)

    # ---- prologue: h, h1, h2^T ----
    h_bf16, h1, h2t = pl.pallas_call(
        _proj_kernel,
        out_shape=[
            jax.ShapeDtypeStruct((n_pad, f_pad), jnp.bfloat16),  # h
            jax.ShapeDtypeStruct((n_pad, 1), jnp.float32),       # h1
            jax.ShapeDtypeStruct((1, n_pad), jnp.float32),       # h2^T
        ],
        grid_spec=pltpu.PrefetchScalarGridSpec(
            num_scalar_prefetch=0,
            grid=(n_row,),
            in_specs=[
                pl.BlockSpec((tm, f_in), lambda i: (i, 0)),      # x
                pl.BlockSpec((f_in, f_pad), lambda i: (0, 0)),   # W
                pl.BlockSpec((1, f_pad), lambda i: (0, 0)),      # a1 row
                pl.BlockSpec((1, f_pad), lambda i: (0, 0)),      # a2 row
            ],
            out_specs=[
                pl.BlockSpec((tm, f_pad), lambda i: (i, 0)),
                pl.BlockSpec((tm, 1), lambda i: (i, 0)),
                pl.BlockSpec((1, tm), lambda i: (0, i)),
            ],
        ),
        compiler_params=pltpu.CompilerParams(
            dimension_semantics=("parallel",),
            vmem_limit_bytes=32 * 1024 * 1024,
        ),
    )(x_p, w_p, a1, a2)

    # ---- flash-style masked softmax attention ----
    if resident:
        hk_spec = pl.BlockSpec((n_pad, f_pad), lambda i, k: (0, 0))
        h2t_spec = pl.BlockSpec((1, n_pad), lambda i, k: (0, 0))
        bias_spec = pl.BlockSpec((1, n_pad), lambda i, k: (0, 0))
    else:
        hk_spec = pl.BlockSpec((tn, f_pad), lambda i, k: (k, 0))
        h2t_spec = pl.BlockSpec((1, tn), lambda i, k: (0, k))
        bias_spec = pl.BlockSpec((1, tn), lambda i, k: (0, k))

    attn_kernel = functools.partial(
        _attn_kernel, alpha=float(alpha), block_n=tn,
        resident=resident, has_pad=(N < n_pad))

    out_pad = pl.pallas_call(
        attn_kernel,
        out_shape=jax.ShapeDtypeStruct((n_pad, f_pad), jnp.float32),
        grid_spec=pltpu.PrefetchScalarGridSpec(
            num_scalar_prefetch=0,
            grid=(n_row, n_col),
            in_specs=[
                pl.BlockSpec((tm, tn), lambda i, k: (i, k)),    # adj (int8)
                hk_spec,                                         # h (keys)
                pl.BlockSpec((tm, 1), lambda i, k: (i, 0)),      # h1 (queries)
                h2t_spec,                                        # h2^T slab
                bias_spec,                                       # pad bias slab
            ],
            out_specs=pl.BlockSpec((tm, f_pad), lambda i, k: (i, 0)),
            scratch_shapes=[
                pltpu.VMEM((tm, 1), jnp.float32),   # running max
                pltpu.VMEM((tm, 1), jnp.float32),   # running sum
            ],
        ),
        compiler_params=pltpu.CompilerParams(
            dimension_semantics=("parallel", "arbitrary"),
            vmem_limit_bytes=vmem_limit,
        ),
    )(adj_i8, h_bf16, h1, h2t, pad_bias)

    return out_pad[:N, :f_out]


# --------------------------------------------------------------------------
# Reference / demo
# --------------------------------------------------------------------------
def _xavier_uniform(key, shape, dtype=jnp.float32, gain=1.0):
    fan_in, fan_out = shape[0], shape[1]
    bound = gain * math.sqrt(6.0 / (fan_in + fan_out))
    return jax.random.uniform(key, shape, dtype, minval=-bound, maxval=bound)


def _reference_gat(x, adj, W, a, alpha):
    """Plain-JAX f32 reference mirroring the given PyTorch forward (eval)."""
    f_out = W.shape[1]
    h = x @ W
    e = (h @ a[:f_out, :]) + (h @ a[f_out:, :]).T
    e = jnp.where(e > 0, e, alpha * e)
    att = jnp.where(adj > 0, e, jnp.zeros_like(e))   # zero-mask, as in the module
    att = jax.nn.softmax(att, axis=1)
    h_prime = att @ h
    return jnp.where(h_prime > 0, h_prime, jnp.exp(h_prime) - 1.0)


if __name__ == "__main__":
    # Small, module-consistent shapes (N nodes, in -> out features).
    N = 200                # exercises node padding (200 -> 256) and a 2x2 grid
    in_features = 32
    out_features = 16
    alpha = 0.2            # LeakyReLU negative slope
    # dropout = 0.6        # unused: eval mode

    key = jax.random.PRNGKey(0)
    kx, kadj, kw, ka = jax.random.split(key, 4)

    x = jax.random.normal(kx, (N, in_features), dtype=jnp.float32)
    adj = (jax.random.uniform(kadj, (N, N)) > 0.5).astype(jnp.float32)
    adj = jnp.maximum(adj, jnp.eye(N, dtype=jnp.float32))  # self-edges

    W = _xavier_uniform(kw, (in_features, out_features))
    a = _xavier_uniform(ka, (2 * out_features, 1))

    # Small tiles for the demo so the streaming-softmax (multi-k) path,
    # padded-column masking and the resident-h slicing all get exercised.
    out = gat_forward(x, adj, W, a, alpha=alpha, tm=128, tn=128)
    out = jax.block_until_ready(out)
    assert out.shape == (N, out_features)

    ref = _reference_gat(x, adj, W, a, alpha)
    # bf16 MXU operands are the remaining accuracy loss => loose tolerance.
    assert jnp.allclose(out, ref, atol=6e-2, rtol=6e-2), "mismatch vs reference"

    print("KERNEL_OK")
</pallas_src>

<mosaic_0001>
module attributes {stable_mosaic.version = 11 : i64} {
  func.func @_proj_kernel(%arg0: i32, %arg1: memref<128x32xbf16, #tpu.memory_space<vmem>>, %arg2: memref<32x128xbf16, #tpu.memory_space<vmem>>, %arg3: memref<1x128xf32, #tpu.memory_space<vmem>>, %arg4: memref<1x128xf32, #tpu.memory_space<vmem>>, %arg5: memref<128x128xbf16, #tpu.memory_space<vmem>>, %arg6: memref<128x1xf32, #tpu.memory_space<vmem>>, %arg7: memref<1x128xf32, #tpu.memory_space<vmem>>) attributes {dimension_semantics = [#tpu.dimension_semantics<parallel>], iteration_bounds = array<i64: 2>, scalar_prefetch = 0 : i64, scratch_operands = 0 : i64, tpu.core_type = #tpu.core_type<tc>, window_params = [{transform_indices = @transform_0, window_bounds = array<i64: 128, 32>}, {pipeline_mode = #tpu.pipeline_mode<synchronous>, transform_indices = @transform_1, window_bounds = array<i64: 32, 128>}, {pipeline_mode = #tpu.pipeline_mode<synchronous>, transform_indices = @transform_2, window_bounds = array<i64: 1, 128>}, {pipeline_mode = #tpu.pipeline_mode<synchronous>, transform_indices = @transform_3, window_bounds = array<i64: 1, 128>}, {transform_indices = @transform_4, window_bounds = array<i64: 128, 128>}, {transform_indices = @transform_5, window_bounds = array<i64: 128, 1>}, {transform_indices = @transform_6, window_bounds = array<i64: 1, 128>}]} {
    %c0 = arith.constant 0 : index
    %c0_0 = arith.constant 0 : index
    %0 = vector.load %arg1[%c0, %c0_0] : memref<128x32xbf16, #tpu.memory_space<vmem>>, vector<128x32xbf16>
    %c0_1 = arith.constant 0 : index
    %c0_2 = arith.constant 0 : index
    %1 = vector.load %arg2[%c0_1, %c0_2] : memref<32x128xbf16, #tpu.memory_space<vmem>>, vector<32x128xbf16>
    %cst = arith.constant dense<0.000000e+00> : vector<128x128xf32>
    %2 = tpu.matmul %0, %1, %cst {dimension_numbers = #tpu.dot_dimension_numbers<[1], [0], [0], [1], [0, 0, 1, 1], [], []>} : vector<128x32xbf16>, vector<32x128xbf16>, vector<128x128xf32> -> vector<128x128xf32>
    %3 = arith.truncf %2 : vector<128x128xf32> to vector<128x128xbf16>
    %c0_3 = arith.constant 0 : index
    %c0_4 = arith.constant 0 : index
    %4 = vector.load %arg5[%c0_3, %c0_4] : memref<128x128xbf16, #tpu.memory_space<vmem>>, vector<128x128xbf16>
    tpu.vector_store %arg5[%c0_3, %c0_4], %3 {strides = array<i32>} : memref<128x128xbf16, #tpu.memory_space<vmem>>, vector<128x128xbf16>,
    %c0_5 = arith.constant 0 : index
    %c0_6 = arith.constant 0 : index
    %5 = vector.load %arg3[%c0_5, %c0_6] : memref<1x128xf32, #tpu.memory_space<vmem>>, vector<1x128xf32>
    %6 = vector.broadcast %5 : vector<1x128xf32> to vector<128x128xf32>
    %7 = arith.mulf %2, %6 : vector<128x128xf32>
    %cst_7 = arith.constant dense<0.000000e+00> : vector<128xf32>
    %8 = vector.multi_reduction <add>, %7, %cst_7 [1] : vector<128x128xf32> to vector<128xf32>
    %9 = vector.shape_cast %8 : vector<128xf32> to vector<128x1xf32>
    %c0_8 = arith.constant 0 : index
    %c0_9 = arith.constant 0 : index
    %10 = vector.load %arg6[%c0_8, %c0_9] : memref<128x1xf32, #tpu.memory_space<vmem>>, vector<128x1xf32>
    tpu.vector_store %arg6[%c0_8, %c0_9], %9 {strides = array<i32>} : memref<128x1xf32, #tpu.memory_space<vmem>>, vector<128x1xf32>,
    %c0_10 = arith.constant 0 : index
    %c0_11 = arith.constant 0 : index
    %11 = vector.load %arg4[%c0_10, %c0_11] : memref<1x128xf32, #tpu.memory_space<vmem>>, vector<1x128xf32>
    %cst_12 = arith.constant dense<0.000000e+00> : vector<1x128xf32>
    %12 = tpu.matmul %11, %2, %cst_12 {dimension_numbers = #tpu.dot_dimension_numbers<[1], [1], [0], [0], [0, 0, 1, 0], [], []>} : vector<1x128xf32>, vector<128x128xf32>, vector<1x128xf32> -> vector<1x128xf32>
    %c0_13 = arith.constant 0 : index
    %c0_14 = arith.constant 0 : index
    %13 = vector.load %arg7[%c0_13, %c0_14] : memref<1x128xf32, #tpu.memory_space<vmem>>, vector<1x128xf32>
    tpu.vector_store %arg7[%c0_13, %c0_14], %12 {strides = array<i32>} : memref<1x128xf32, #tpu.memory_space<vmem>>, vector<1x128xf32>,
    return
  }
  func.func @transform_0(%arg0: i32) -> (i32, i32) {
    %c0_i32 = arith.constant 0 : i32
    %c0_i32_0 = arith.constant 0 : i32
    return %arg0, %c0_i32 : i32, i32
  }
  func.func @transform_1(%arg0: i32) -> (i32, i32) {
    %c0_i32 = arith.constant 0 : i32
    %c0_i32_0 = arith.constant 0 : i32
    %c0_i32_1 = arith.constant 0 : i32
    return %c0_i32, %c0_i32_0 : i32, i32
  }
  func.func @transform_2(%arg0: i32) -> (i32, i32) {
    %c0_i32 = arith.constant 0 : i32
    %c0_i32_0 = arith.constant 0 : i32
    %c0_i32_1 = arith.constant 0 : i32
    return %c0_i32, %c0_i32_0 : i32, i32
  }
  func.func @transform_3(%arg0: i32) -> (i32, i32) {
    %c0_i32 = arith.constant 0 : i32
    %c0_i32_0 = arith.constant 0 : i32
    %c0_i32_1 = arith.constant 0 : i32
    return %c0_i32, %c0_i32_0 : i32, i32
  }
  func.func @transform_4(%arg0: i32) -> (i32, i32) {
    %c0_i32 = arith.constant 0 : i32
    %c0_i32_0 = arith.constant 0 : i32
    return %arg0, %c0_i32 : i32, i32
  }
  func.func @transform_5(%arg0: i32) -> (i32, i32) {
    %c0_i32 = arith.constant 0 : i32
    %c0_i32_0 = arith.constant 0 : i32
    return %arg0, %c0_i32 : i32, i32
  }
  func.func @transform_6(%arg0: i32) -> (i32, i32) {
    %c0_i32 = arith.constant 0 : i32
    %c0_i32_0 = arith.constant 0 : i32
    return %c0_i32, %arg0 : i32, i32
  }
}

</mosaic_0001>

<llo_original>
// kernel: tpu_custom_call.1
$region0: #{tpu_custom_call.1}
  #allocation0 [shape = 'u32[]', space=smem, size = 0x4, offset = 0x4, fixed_abs, tag = 'smem constant byte address 0x4 - core index']
  #allocation1 [shape = 'u32[72,128]{1,0:T(1,128)}', space=vmem, size = 0x9000, scoped, tag = 'internal scratch']
  %s0 = inlined_call_operand.vmem [shape: bf16[256,32], index: 0, kind: input, shape index: {}]
  %s1 = inlined_call_operand.vmem [shape: bf16[32,128], index: 1, kind: input, shape index: {}]
  %s2 = inlined_call_operand.vmem [shape: f32[1,128], index: 2, kind: input, shape index: {}]
  %s3 = inlined_call_operand.vmem [shape: f32[1,128], index: 3, kind: input, shape index: {}]
  %s4 = inlined_call_operand.hbm [shape: bf16[256,128], index: 4, kind: output, shape index: {0}]
  %s5 = inlined_call_operand.vmem [shape: f32[256,1], index: 5, kind: output, shape index: {1}]
  %s6 = inlined_call_operand.hbm [shape: f32[1,256], index: 6, kind: output, shape index: {2}]
  %7 = xla_tuple %s4, %s5, %s6
  %s8 = sld [smem:[#allocation0]]
  $region65: #{tpu_custom_call.1} parent=0
    _
  %s10 = ssub.s32 1, %s8
  %s11 = scalar_select 0, %s10, %s8
  $region1: #{tpu_custom_call.1} parent=0
    #allocation2 [shape = 'u8[65536]{0}', space=vmem, size = 0x10000, scoped, tag = 'output window, operand 0']
    #allocation3 [shape = 's32[2]{0}', space=sflag, size = 0x8, scoped, tag = 'scoped memory for tpu_custom_call.1']
    #allocation4 [shape = 'u8[1024]{0}', space=vmem, size = 0x400, scoped, tag = 'output window, operand 2']
    #allocation5 [shape = 's32[2]{0}', space=sflag, size = 0x8, scoped, tag = 'scoped memory for tpu_custom_call.1']
    %12 = vsyncpa [#allocation3], 0
    %s13 = scalar_lea.sflag [#allocation3], 1
    %14 = vsyncpa %s13, 0
    %15 = vsyncpa [#allocation5], 0
    %s16 = scalar_lea.sflag [#allocation5], 1
    %17 = vsyncpa %s16, 0
    loop: start=0, step=1, limit=4
    $region2: #{tpu_custom_call.1} parent=1 // loop_pre_header
      _
    $region3: #{tpu_custom_call.1} parent=1 // loop_header
      %s19 = sphi 0, %s23
      %p20 = scmp.ge.s32.totalorder %s19, 4
      %s29 = sphi 0, %s31
      %s32 = sphi 0, %s29
      %s33 = sphi 0, %s32
      %s49 = sphi 0, %s33
      %s53 = sphi 0, %s53
      %s55 = sphi 0, %s53
      %s56 = sphi 0, %s55
      %s70 = sphi 0, %s56
      %s74 = sphi 0, %s74
      %s76 = sphi 0, %s74
      %s77 = sphi 0, %s76
      %s91 = sphi 0, %s77
      %s95 = sphi 0, %s95
      %s97 = sphi 0, %s95
      %s98 = sphi 0, %s97
      %s112 = sphi 0, %s98
      %s118 = sphi 0, %s120
      %s121 = sphi 0, %s118
      %s122 = sphi 0, %s121
      %s138 = sphi 0, %s122
      %s144 = sphi 0, %s146
      %s147 = sphi 0, %s144
      %s148 = sphi 0, %s147
      %s164 = sphi 0, %s148
      %s170 = sphi 0, %s172
      %s173 = sphi 0, %s170
      %s174 = sphi 0, %s173
      %s190 = sphi 0, %s174
    $region4: #{tpu_custom_call.1} parent=1 // loop_header_branch
      %22 = sbr.rel (%p20) target = $region8
    $region5: #{tpu_custom_call.1} parent=1 // loop_body
      %s24 = ssub.s32 %s19, 1
      %s25 = ssub.s32 %s19, 2
      %s26 = sadd.s32 %s19, 1
      %s27 = ssub.s32 %s19, %s26
      %p28 = scmp.eq.s32.totalorder %s27, 0
      %s30 = sadd.s32 %s29, 1
      %s31 = scalar_select %p28, %s29, %s30
      %p34 = pneg %p28
      %p35 = scmp.eq.s32.totalorder %s19, 1
      %p36 = por %p34, %p35
      %p37 = scmp.ne.s32.totalorder %s29, %s32
      %p38 = scmp.eq.s32.totalorder %s19, 0
      %p39 = por %p37, %p38
      %p40 = scmp.ne.s32.totalorder %s29, %s32
      %p41 = scmp.eq.s32.totalorder %s24, 1
      %p42 = por %p40, %p41
      %p43 = scmp.ne.s32.totalorder %s32, %s33
      %p44 = scmp.eq.s32.totalorder %s24, 0
      %p45 = por %p43, %p44
      %p46 = scmp.ne.s32.totalorder %s32, %s33
      %p47 = scmp.eq.s32.totalorder %s25, 1
      %p48 = por %p46, %p47
      %p50 = scmp.ne.s32.totalorder %s33, %s49
      %p51 = scmp.eq.s32.totalorder %s25, 0
      %p52 = por %p50, %p51
      %s54 = sadd.s32 %s53, 1
      %p57 = scmp.eq.s32.totalorder %s19, 1
      %p58 = scmp.ne.s32.totalorder %s53, %s55
      %p59 = scmp.eq.s32.totalorder %s19, 0
      %p60 = por %p58, %p59
      %p61 = scmp.ne.s32.totalorder %s53, %s55
      %p62 = scmp.eq.s32.totalorder %s24, 1
      %p63 = por %p61, %p62
      %p64 = scmp.ne.s32.totalorder %s55, %s56
      %p65 = scmp.eq.s32.totalorder %s24, 0
      %p66 = por %p64, %p65
      %p67 = scmp.ne.s32.totalorder %s55, %s56
      %p68 = scmp.eq.s32.totalorder %s25, 1
      %p69 = por %p67, %p68
      %p71 = scmp.ne.s32.totalorder %s56, %s70
      %p72 = scmp.eq.s32.totalorder %s25, 0
      %p73 = por %p71, %p72
      %s75 = sadd.s32 %s74, 1
      %p78 = scmp.eq.s32.totalorder %s19, 1
      %p79 = scmp.ne.s32.totalorder %s74, %s76
      %p80 = scmp.eq.s32.totalorder %s19, 0
      %p81 = por %p79, %p80
      %p82 = scmp.ne.s32.totalorder %s74, %s76
      %p83 = scmp.eq.s32.totalorder %s24, 1
      %p84 = por %p82, %p83
      %p85 = scmp.ne.s32.totalorder %s76, %s77
      %p86 = scmp.eq.s32.totalorder %s24, 0
      %p87 = por %p85, %p86
      %p88 = scmp.ne.s32.totalorder %s76, %s77
      %p89 = scmp.eq.s32.totalorder %s25, 1
      %p90 = por %p88, %p89
      %p92 = scmp.ne.s32.totalorder %s77, %s91
      %p93 = scmp.eq.s32.totalorder %s25, 0
      %p94 = por %p92, %p93
      %s96 = sadd.s32 %s95, 1
      %p99 = scmp.eq.s32.totalorder %s19, 1
      %p100 = scmp.ne.s32.totalorder %s95, %s97
      %p101 = scmp.eq.s32.totalorder %s19, 0
      %p102 = por %p100, %p101
      %p103 = scmp.ne.s32.totalorder %s95, %s97
      %p104 = scmp.eq.s32.totalorder %s24, 1
      %p105 = por %p103, %p104
      %p106 = scmp.ne.s32.totalorder %s97, %s98
      %p107 = scmp.eq.s32.totalorder %s24, 0
      %p108 = por %p106, %p107
      %p109 = scmp.ne.s32.totalorder %s97, %s98
      %p110 = scmp.eq.s32.totalorder %s25, 1
      %p111 = por %p109, %p110
      %p113 = scmp.ne.s32.totalorder %s98, %s112
      %p114 = scmp.eq.s32.totalorder %s25, 0
      %p115 = por %p113, %p114
      %s116 = ssub.s32 %s19, %s26
      %p117 = scmp.eq.s32.totalorder %s116, 0
      %s119 = sadd.s32 %s118, 1
      %s120 = scalar_select %p117, %s118, %s119
      %p123 = pneg %p117
      %p124 = scmp.eq.s32.totalorder %s19, 1
      %p125 = por %p123, %p124
      %p126 = scmp.ne.s32.totalorder %s118, %s121
      %p127 = scmp.eq.s32.totalorder %s19, 0
      %p128 = por %p126, %p127
      %p129 = scmp.ne.s32.totalorder %s118, %s121
      %p130 = scmp.eq.s32.totalorder %s24, 1
      %p131 = por %p129, %p130
      %p132 = scmp.ne.s32.totalorder %s121, %s122
      %p133 = scmp.eq.s32.totalorder %s24, 0
      %p134 = por %p132, %p133
      %p135 = scmp.ne.s32.totalorder %s121, %s122
      %p136 = scmp.eq.s32.totalorder %s25, 1
      %p137 = por %p135, %p136
      %p139 = scmp.ne.s32.totalorder %s122, %s138
      %p140 = scmp.eq.s32.totalorder %s25, 0
      %p141 = por %p139, %p140
      %s142 = ssub.s32 %s19, %s26
      %p143 = scmp.eq.s32.totalorder %s142, 0
      %s145 = sadd.s32 %s144, 1
      %s146 = scalar_select %p143, %s144, %s145
      %p149 = pneg %p143
      %p150 = scmp.eq.s32.totalorder %s19, 1
      %p151 = por %p149, %p150
      %p152 = scmp.ne.s32.totalorder %s144, %s147
      %p153 = scmp.eq.s32.totalorder %s19, 0
      %p154 = por %p152, %p153
      %p155 = scmp.ne.s32.totalorder %s144, %s147
      %p156 = scmp.eq.s32.totalorder %s24, 1
      %p157 = por %p155, %p156
      %p158 = scmp.ne.s32.totalorder %s147, %s148
      %p159 = scmp.eq.s32.totalorder %s24, 0
      %p160 = por %p158, %p159
      %p161 = scmp.ne.s32.totalorder %s147, %s148
      %p162 = scmp.eq.s32.totalorder %s25, 1
      %p163 = por %p161, %p162
      %p165 = scmp.ne.s32.totalorder %s148, %s164
      %p166 = scmp.eq.s32.totalorder %s25, 0
      %p167 = por %p165, %p166
      %s168 = ssub.s32 %s19, %s26
      %p169 = scmp.eq.s32.totalorder %s168, 0
      %s171 = sadd.s32 %s170, 1
      %s172 = scalar_select %p169, %s170, %s171
      %p175 = pneg %p169
      %p176 = scmp.eq.s32.totalorder %s19, 1
      %p177 = por %p175, %p176
      %p178 = scmp.ne.s32.totalorder %s170, %s173
      %p179 = scmp.eq.s32.totalorder %s19, 0
      %p180 = por %p178, %p179
      %p181 = scmp.ne.s32.totalorder %s170, %s173
      %p182 = scmp.eq.s32.totalorder %s24, 1
      %p183 = por %p181, %p182
      %p184 = scmp.ne.s32.totalorder %s173, %s174
      %p185 = scmp.eq.s32.totalorder %s24, 0
      %p186 = por %p184, %p185
      %p187 = scmp.ne.s32.totalorder %s173, %s174
      %p188 = scmp.eq.s32.totalorder %s25, 1
      %p189 = por %p187, %p188
      %p191 = scmp.ne.s32.totalorder %s174, %s190
      %p192 = scmp.eq.s32.totalorder %s25, 0
      %p193 = por %p191, %p192
      %p194 = scmp.le.s32.totalorder 1, %s19
      %p195 = scmp.lt.s32.totalorder %s19, 3
      %p196 = pnand %p194, %p195
      %p197 = pneg %p196
      // Predicated region
      $region9: #{tpu_custom_call.1} parent=5 // pred_check
        _
      $region10: #{tpu_custom_call.1} parent=5 // pred_check_branch
        %199 = sbr.rel (%p196) target = $region12
      $region11: #{tpu_custom_call.1} parent=5 // pred_region
        %s200 = ssub.s32 %s19, 1
        // Predicated region
        $region13: #{tpu_custom_call.1} parent=11 // pred_check
          %p201 = pneg %p66
        $region14: #{tpu_custom_call.1} parent=11 // pred_check_branch
          %203 = sbr.rel (%p201) target = $region16
        $region15: #{tpu_custom_call.1} parent=11 // pred_region
          _
        $region16: #{tpu_custom_call.1} parent=11 // pred_fallthru
          _
        // Predicated region
        $region17: #{tpu_custom_call.1} parent=11 // pred_check
          %p204 = pneg %p87
        $region18: #{tpu_custom_call.1} parent=11 // pred_check_branch
          %206 = sbr.rel (%p204) target = $region20
        $region19: #{tpu_custom_call.1} parent=11 // pred_region
          _
        $region20: #{tpu_custom_call.1} parent=11 // pred_fallthru
          _
        // Predicated region
        $region21: #{tpu_custom_call.1} parent=11 // pred_check
          %p207 = pneg %p108
        $region22: #{tpu_custom_call.1} parent=11 // pred_check_branch
          %209 = sbr.rel (%p207) target = $region24
        $region23: #{tpu_custom_call.1} parent=11 // pred_region
          _
        $region24: #{tpu_custom_call.1} parent=11 // pred_fallthru
          _
      $region12: #{tpu_custom_call.1} parent=5 // pred_fallthru
        _
      %p210 = scmp.lt.s32.totalorder %s19, 2
      // Predicated region
      $region25: #{tpu_custom_call.1} parent=5 // pred_check
        %p211 = pneg %p210
      $region26: #{tpu_custom_call.1} parent=5 // pred_check_branch
        %213 = sbr.rel (%p211) target = $region28
      $region27: #{tpu_custom_call.1} parent=5 // pred_region
        // Predicated region
        $region29: #{tpu_custom_call.1} parent=27 // pred_check
          %p214 = pneg %p39
        $region30: #{tpu_custom_call.1} parent=27 // pred_check_branch
          %216 = sbr.rel (%p214) target = $region32
        $region31: #{tpu_custom_call.1} parent=27 // pred_region
          %s217 = smul.u32 16, %s19
          %p218 = scmp.lt.s32.totalorder %s217, 31
          %s219 = scalar_select %p218, %s217, 31
          %s220 = smul.addr %s219, 4
          %s221 = scalar_lea.vmem %s0, %s220
          %s222 = smul.u32 16, %s19
        $region32: #{tpu_custom_call.1} parent=27 // pred_fallthru
          _
      $region28: #{tpu_custom_call.1} parent=5 // pred_fallthru
        _
      %p223 = scmp.le.s32.totalorder 1, %s19
      %p224 = scmp.lt.s32.totalorder %s19, 3
      %p225 = pnand %p223, %p224
      %p226 = pneg %p225
      // Predicated region
      $region33: #{tpu_custom_call.1} parent=5 // pred_check
        _
      $region34: #{tpu_custom_call.1} parent=5 // pred_check_branch
        %228 = sbr.rel (%p225) target = $region36
      $region35: #{tpu_custom_call.1} parent=5 // pred_region
        %s229 = ssub.s32 %s19, 1
        %s230 = smul.u32 16, %s24
        %p231 = scmp.lt.s32.totalorder %s230, 31
        %s232 = scalar_select %p231, %s230, 31
        %s233 = smul.addr %s232, 4
        %s234 = scalar_lea.vmem %s0, %s233
        %p235 = pneg %p45
        %p236 = pneg %p42
        %p237 = pneg %p66
        %p238 = pneg %p63
        %p239 = pneg %p87
        %p240 = pneg %p84
        %p241 = pneg %p108
        %p242 = pneg %p105
        %p243 = pneg %p134
        %p244 = pneg %p131
        %s245 = sand.u32 %s121, 1
        %s246 = scalar_lea.sflag [#allocation3], %s245
        %s247 = sand.u32 %s121, 1
        %s248 = smul.addr %s247, 64
        %s249 = scalar_lea.vmem [#allocation2], %s248
        %p250 = pneg %p160
        %p251 = pneg %p157
        %s252 = smul.u32 16, %s24
        %p253 = scmp.lt.s32.totalorder %s252, 31
        %s254 = scalar_select %p253, %s252, 31
        %s255 = smul.addr %s254, 8
        %s256 = scalar_lea.vmem %s5, %s255
        %p257 = pneg %p186
        %p258 = pneg %p183
        %s259 = sand.u32 %s173, 1
        %s260 = scalar_lea.sflag [#allocation5], %s259
        %s261 = sand.u32 %s173, 1
        %s262 = scalar_lea.vmem [#allocation4], %s261
        %s263 = smul.u32 16, %s24
        %p264 = scmp.lt.s32.totalorder %s263, 31
        %s265 = scalar_select %p264, %s263, 31
        %s266 = smul.addr %s265, 4
        %s267 = scalar_lea.vmem %s0, %s266
        %s268 = smul.u32 16, %s24
        %s269 = smul.u32 16, %s24
        %s270 = smul.u32 16, %s24
        %p271 = scmp.lt.s32.totalorder %s270, 31
        %s272 = scalar_select %p271, %s270, 31
        %s273 = smul.addr %s272, 8
        %s274 = scalar_lea.vmem %s5, %s273
        %s275 = smul.u32 16, %s24
        %v277 = vld [vmem:[%s267] sm:$0xf]
        %v278 = vld [vmem:[%s267 + $0x4] sm:$0xf]
        %v279 = vld [vmem:[%s267 + $0x8] sm:$0xf]
        %v280 = vld [vmem:[%s267 + $0xc] sm:$0xf]
        %v281 = vld [vmem:[%s267 + $0x10] sm:$0xf]
        %v282 = vld [vmem:[%s267 + $0x14] sm:$0xf]
        %v283 = vld [vmem:[%s267 + $0x18] sm:$0xf]
        %v284 = vld [vmem:[%s267 + $0x1c] sm:$0xf]
        %v285 = vld [vmem:[%s267 + $0x20] sm:$0xf]
        %v286 = vld [vmem:[%s267 + $0x24] sm:$0xf]
        %v287 = vld [vmem:[%s267 + $0x28] sm:$0xf]
        %v288 = vld [vmem:[%s267 + $0x2c] sm:$0xf]
        %v289 = vld [vmem:[%s267 + $0x30] sm:$0xf]
        %v290 = vld [vmem:[%s267 + $0x34] sm:$0xf]
        %v291 = vld [vmem:[%s267 + $0x38] sm:$0xf]
        %v292 = vld [vmem:[%s267 + $0x3c] sm:$0xf]
        %v293 = vld [vmem:[%s1] sm:$0xf]
        %v294 = vld [vmem:[%s1 + $0x4] sm:$0xf]
        %v295 = vld [vmem:[%s1 + $0x8] sm:$0xf]
        %v296 = vld [vmem:[%s1 + $0xc] sm:$0xf]
        %v313 = vunpack.c.l.b16 %v277
        %v314 = vunpack.c.l.b16 %v278
        %v315 = vunpack.c.l.b16 %v279
        %v316 = vunpack.c.l.b16 %v280
        %v317 = vunpack.c.l.b16 %v281
        %v318 = vunpack.c.l.b16 %v282
        %v319 = vunpack.c.l.b16 %v283
        %v320 = vunpack.c.l.b16 %v284
        %v321 = vunpack.c.l.b16 %v285
        %v322 = vunpack.c.l.b16 %v286
        %v323 = vunpack.c.l.b16 %v287
        %v324 = vunpack.c.l.b16 %v288
        %v325 = vunpack.c.l.b16 %v289
        %v326 = vunpack.c.l.b16 %v290
        %v327 = vunpack.c.l.b16 %v291
        %v328 = vunpack.c.l.b16 %v292
        %v329 = vpack.c.b16 %v314, %v313
        %v330 = vpack.c.b16 %v316, %v315
        %v331 = vpack.c.b16 %v318, %v317
        %v332 = vpack.c.b16 %v320, %v319
        %v333 = vpack.c.b16 %v322, %v321
        %v334 = vpack.c.b16 %v324, %v323
        %v335 = vpack.c.b16 %v326, %v325
        %v336 = vpack.c.b16 %v328, %v327
        %v341 = vunpack.c.l.b16 %v293
        %v342 = vunpack.c.l.b16 %v294
        %v343 = vunpack.c.l.b16 %v295
        %v344 = vunpack.c.l.b16 %v296
        %v345 = vpack.c.b16 %v342, %v341
        %v346 = vpack.c.b16 %v344, %v343
        %vm349 = vcmask 261120
        %v351 = vsel %vm349, %v329, 0
        %v354 = vsel %vm349, %v330, 0
        %v357 = vsel %vm349, %v331, 0
        %v360 = vsel %vm349, %v332, 0
        %v363 = vsel %vm349, %v333, 0
        %v366 = vsel %vm349, %v334, 0
        %v369 = vsel %vm349, %v335, 0
        %v372 = vsel %vm349, %v336, 0
        %374 = vmatpush.bf16.msra.mxu0 0
        %375 = vmatpush.bf16.msra.mxu0 0
        %376 = vmatpush.bf16.msra.mxu0 0
        %377 = vmatpush.bf16.msra.mxu0 0
        %378 = vmatpush.bf16.msra.mxu0 0
        %379 = vmatpush.bf16.msra.mxu0 0
        %380 = vmatpush.bf16.msra.mxu0 %v346
        %381 = vmatpush.bf16.msra.mxu0 %v345
        %382 = vmatmul.bf16.gmra.mxu0 %v351
        %v383 = vpop.f32.mrf.mxu0
        %v384 = vadd.f32 0.0, %v383
        %v385 = vpop.f32.mrf.mxu0
        %v386 = vadd.f32 0.0, %v385
        %387 = vmatmul.bf16.gmra.mxu0 %v354
        %v388 = vpop.f32.mrf.mxu0
        %v389 = vadd.f32 0.0, %v388
        %v390 = vpop.f32.mrf.mxu0
        %v391 = vadd.f32 0.0, %v390
        %392 = vmatmul.bf16.gmra.mxu0 %v357
        %v393 = vpop.f32.mrf.mxu0
        %v394 = vadd.f32 0.0, %v393
        %v395 = vpop.f32.mrf.mxu0
        %v396 = vadd.f32 0.0, %v395
        %397 = vmatmul.bf16.gmra.mxu0 %v360
        %v398 = vpop.f32.mrf.mxu0
        %v399 = vadd.f32 0.0, %v398
        %v400 = vpop.f32.mrf.mxu0
        %v401 = vadd.f32 0.0, %v400
        %402 = vmatmul.bf16.gmra.mxu0 %v363
        %v403 = vpop.f32.mrf.mxu0
        %v404 = vadd.f32 0.0, %v403
        %v405 = vpop.f32.mrf.mxu0
        %v406 = vadd.f32 0.0, %v405
        %407 = vmatmul.bf16.gmra.mxu0 %v366
        %v408 = vpop.f32.mrf.mxu0
        %v409 = vadd.f32 0.0, %v408
        %v410 = vpop.f32.mrf.mxu0
        %v411 = vadd.f32 0.0, %v410
        %412 = vmatmul.bf16.gmra.mxu0 %v369
        %v413 = vpop.f32.mrf.mxu0
        %v414 = vadd.f32 0.0, %v413
        %v415 = vpop.f32.mrf.mxu0
        %v416 = vadd.f32 0.0, %v415
        %417 = vmatmul.bf16.gmra.mxu0 %v372
        %v418 = vpop.f32.mrf.mxu0
        %v419 = vadd.f32 0.0, %v418
        %v420 = vpop.f32.mrf.mxu0
        %v421 = vadd.f32 0.0, %v420
        %422 = vdwg.mxu0
        %v423 = vpack.c.bf16 %v384, %v384
        %v424 = vpack.c.bf16 %v386, %v386
        %v425 = vpack.c.bf16 %v389, %v389
        %v426 = vpack.c.bf16 %v391, %v391
        %v427 = vpack.c.bf16 %v394, %v394
        %v428 = vpack.c.bf16 %v396, %v396
        %v429 = vpack.c.bf16 %v399, %v399
        %v430 = vpack.c.bf16 %v401, %v401
        %v431 = vpack.c.bf16 %v404, %v404
        %v432 = vpack.c.bf16 %v406, %v406
        %v433 = vpack.c.bf16 %v409, %v409
        %v434 = vpack.c.bf16 %v411, %v411
        %v435 = vpack.c.bf16 %v414, %v414
        %v436 = vpack.c.bf16 %v416, %v416
        %v437 = vpack.c.bf16 %v419, %v419
        %v438 = vpack.c.bf16 %v421, %v421
        %439 = vst [vmem:[%s249] sm:$0xf] %v423
        %440 = vst [vmem:[%s249 + $0x4] sm:$0xf] %v424
        %441 = vst [vmem:[%s249 + $0x8] sm:$0xf] %v425
        %442 = vst [vmem:[%s249 + $0xc] sm:$0xf] %v426
        %443 = vst [vmem:[%s249 + $0x10] sm:$0xf] %v427
        %444 = vst [vmem:[%s249 + $0x14] sm:$0xf] %v428
        %445 = vst [vmem:[%s249 + $0x18] sm:$0xf] %v429
        %446 = vst [vmem:[%s249 + $0x1c] sm:$0xf] %v430
        %447 = vst [vmem:[%s249 + $0x20] sm:$0xf] %v431
        %448 = vst [vmem:[%s249 + $0x24] sm:$0xf] %v432
        %449 = vst [vmem:[%s249 + $0x28] sm:$0xf] %v433
        %450 = vst [vmem:[%s249 + $0x2c] sm:$0xf] %v434
        %451 = vst [vmem:[%s249 + $0x30] sm:$0xf] %v435
        %452 = vst [vmem:[%s249 + $0x34] sm:$0xf] %v436
        %453 = vst [vmem:[%s249 + $0x38] sm:$0xf] %v437
        %454 = vst [vmem:[%s249 + $0x3c] sm:$0xf] %v438
        %v455 = vld [vmem:[%s2] sm:$0x1]
        %v457 = vperm.slane %v455, 0
        %v459 = vmul.f32 %v384, %v457
        %v460 = vmul.f32 %v386, %v457
        %v461 = vmul.f32 %v389, %v457
        %v462 = vmul.f32 %v391, %v457
        %v463 = vmul.f32 %v394, %v457
        %v464 = vmul.f32 %v396, %v457
        %v465 = vmul.f32 %v399, %v457
        %v466 = vmul.f32 %v401, %v457
        %v467 = vmul.f32 %v404, %v457
        %v468 = vmul.f32 %v406, %v457
        %v469 = vmul.f32 %v409, %v457
        %v470 = vmul.f32 %v411, %v457
        %v471 = vmul.f32 %v414, %v457
        %v472 = vmul.f32 %v416, %v457
        %v473 = vmul.f32 %v419, %v457
        %v474 = vmul.f32 %v421, %v457
        %475 = vadd.xlane.f32.xlu0 %v459
        %v476 = vpop.xlane.xlu0 %475
        %477 = vadd.xlane.f32.xlu0 %v460
        %v478 = vpop.xlane.xlu0 %477
        %479 = vadd.xlane.f32.xlu0 %v461
        %v480 = vpop.xlane.xlu0 %479
        %481 = vadd.xlane.f32.xlu0 %v462
        %v482 = vpop.xlane.xlu0 %481
        %483 = vadd.xlane.f32.xlu0 %v463
        %v484 = vpop.xlane.xlu0 %483
        %485 = vadd.xlane.f32.xlu0 %v464
        %v486 = vpop.xlane.xlu0 %485
        %487 = vadd.xlane.f32.xlu0 %v465
        %v488 = vpop.xlane.xlu0 %487
        %489 = vadd.xlane.f32.xlu0 %v466
        %v490 = vpop.xlane.xlu0 %489
        %491 = vadd.xlane.f32.xlu0 %v467
        %v492 = vpop.xlane.xlu0 %491
        %493 = vadd.xlane.f32.xlu0 %v468
        %v494 = vpop.xlane.xlu0 %493
        %495 = vadd.xlane.f32.xlu0 %v469
        %v496 = vpop.xlane.xlu0 %495
        %497 = vadd.xlane.f32.xlu0 %v470
        %v498 = vpop.xlane.xlu0 %497
        %499 = vadd.xlane.f32.xlu0 %v471
        %v500 = vpop.xlane.xlu0 %499
        %501 = vadd.xlane.f32.xlu0 %v472
        %v502 = vpop.xlane.xlu0 %501
        %503 = vadd.xlane.f32.xlu0 %v473
        %v504 = vpop.xlane.xlu0 %503
        %505 = vadd.xlane.f32.xlu0 %v474
        %v506 = vpop.xlane.xlu0 %505
        %vm507 = vcmask 7168
        %508 = vst.msk [vmem:[%s274] sm:$0xff] %vm507, %v476
        %509 = vst.msk [vmem:[%s274 + $0x8] sm:$0xff] %vm507, %v478
        %510 = vst.msk [vmem:[%s274 + $0x10] sm:$0xff] %vm507, %v480
        %511 = vst.msk [vmem:[%s274 + $0x18] sm:$0xff] %vm507, %v482
        %512 = vst.msk [vmem:[%s274 + $0x20] sm:$0xff] %vm507, %v484
        %513 = vst.msk [vmem:[%s274 + $0x28] sm:$0xff] %vm507, %v486
        %514 = vst.msk [vmem:[%s274 + $0x30] sm:$0xff] %vm507, %v488
        %515 = vst.msk [vmem:[%s274 + $0x38] sm:$0xff] %vm507, %v490
        %516 = vst.msk [vmem:[%s274 + $0x40] sm:$0xff] %vm507, %v492
        %517 = vst.msk [vmem:[%s274 + $0x48] sm:$0xff] %vm507, %v494
        %518 = vst.msk [vmem:[%s274 + $0x50] sm:$0xff] %vm507, %v496
        %519 = vst.msk [vmem:[%s274 + $0x58] sm:$0xff] %vm507, %v498
        %520 = vst.msk [vmem:[%s274 + $0x60] sm:$0xff] %vm507, %v500
        %521 = vst.msk [vmem:[%s274 + $0x68] sm:$0xff] %vm507, %v502
        %522 = vst.msk [vmem:[%s274 + $0x70] sm:$0xff] %vm507, %v504
        %523 = vst.msk [vmem:[%s274 + $0x78] sm:$0xff] %vm507, %v506
        %v524 = vld [vmem:[%s3] sm:$0x1]
        %525 = vmatpush.xpose.msra.mxu0 %v421
        %526 = vmatpush.xpose.msra.mxu0 %v419
        %527 = vmatpush.xpose.msra.mxu0 %v416
        %528 = vmatpush.xpose.msra.mxu0 %v414
        %529 = vmatpush.xpose.msra.mxu0 %v411
        %530 = vmatpush.xpose.msra.mxu0 %v409
        %531 = vmatpush.xpose.msra.mxu0 %v406
        %532 = vmatpush.xpose.msra.mxu0 %v404
        %533 = vmatpush.xpose.msra.mxu0 %v401
        %534 = vmatpush.xpose.msra.mxu0 %v399
        %535 = vmatpush.xpose.msra.mxu0 %v396
        %536 = vmatpush.xpose.msra.mxu0 %v394
        %537 = vmatpush.xpose.msra.mxu0 %v391
        %538 = vmatpush.xpose.msra.mxu0 %v389
        %539 = vmatpush.xpose.msra.mxu0 %v386
        %540 = vmatpush.xpose.msra.mxu0 %v384
        %541 = vmatmul.f32.gmra.mxu0 %v524
        %v542 = vpop.f32.mrf.mxu0
        %v543 = vadd.f32 0.0, %v542
        %544 = vdwg.mxu0
        %545 = vst [vmem:[%s262] sm:$0x1] %v543
        %s546 = sand.u32 %s121, 1
        %s547 = scalar_lea.sflag [#allocation3], %s546
        %s548 = sand.u32 %s121, 1
        %s549 = smul.addr %s548, 64
        %s550 = scalar_lea.vmem [#allocation2], %s549
        %s551 = smul.u32 16, %s24
        %p552 = scmp.lt.s32.totalorder %s551, 31
        %s553 = scalar_select %p552, %s551, 31
        %s554 = smul.addr %s553, 8
        %s555 = scalar_lea.vmem %s5, %s554
        %s556 = sand.u32 %s173, 1
        %s557 = scalar_lea.sflag [#allocation5], %s556
        %s558 = sand.u32 %s173, 1
        %s559 = scalar_lea.vmem [#allocation4], %s558
        // Predicated region
        $region37: #{tpu_custom_call.1} parent=35 // pred_check
          %p560 = pneg %p131
        $region38: #{tpu_custom_call.1} parent=35 // pred_check_branch
          %562 = sbr.rel (%p560) target = $region40
        $region39: #{tpu_custom_call.1} parent=35 // pred_region
          %s563 = smul.u32 16, %s24
          %565 = vsyncadd %s547, 0
          %s566 = smul.addr %s563, 4
          %s567 = scalar_lea.hbm %s4, %s566
          %s568 = sshll.u32 %s550, 4
          %s569 = int_to_ptr.vmem [resolvable:$true] %s568
          %s570 = sshll.u32 %s567, 4
          %s571 = int_to_ptr.hbm [resolvable:$true] %s570
          %576 = dma.vmem_to_hbm [thread:$0]  %s569, 1024, %s571, %s547, 64, 64, 4
        $region40: #{tpu_custom_call.1} parent=35 // pred_fallthru
          _
        // Predicated region
        $region41: #{tpu_custom_call.1} parent=35 // pred_check
          %p577 = pneg %p157
        $region42: #{tpu_custom_call.1} parent=35 // pred_check_branch
          %579 = sbr.rel (%p577) target = $region44
        $region43: #{tpu_custom_call.1} parent=35 // pred_region
          %s580 = smul.u32 16, %s24
        $region44: #{tpu_custom_call.1} parent=35 // pred_fallthru
          _
        // Predicated region
        $region45: #{tpu_custom_call.1} parent=35 // pred_check
          %p581 = pneg %p183
        $region46: #{tpu_custom_call.1} parent=35 // pred_check_branch
          %583 = sbr.rel (%p581) target = $region48
        $region47: #{tpu_custom_call.1} parent=35 // pred_region
          %585 = vsyncadd %s557, 0
          %s586 = scalar_lea.hbm %s6, %s24
          %s588 = sshll.u32 %s559, 4
          %s589 = int_to_ptr.vmem [resolvable:$true] %s588
          %s590 = sshll.u32 %s586, 4
          %s591 = int_to_ptr.hbm [resolvable:$true] %s590
          %593 = dma.vmem_to_hbm [thread:$0]  %s589, 16, %s591, %s557
        $region48: #{tpu_custom_call.1} parent=35 // pred_fallthru
          _
      $region36: #{tpu_custom_call.1} parent=5 // pred_fallthru
        _
      %p594 = scmp.le.s32.totalorder 2, %s19
      // Predicated region
      $region49: #{tpu_custom_call.1} parent=5 // pred_check
        %p595 = pneg %p594
      $region50: #{tpu_custom_call.1} parent=5 // pred_check_branch
        %597 = sbr.rel (%p595) target = $region52
      $region51: #{tpu_custom_call.1} parent=5 // pred_region
        %s598 = ssub.s32 %s19, 2
        // Predicated region
        $region53: #{tpu_custom_call.1} parent=51 // pred_check
          %p599 = pneg %p137
        $region54: #{tpu_custom_call.1} parent=51 // pred_check_branch
          %601 = sbr.rel (%p599) target = $region56
        $region55: #{tpu_custom_call.1} parent=51 // pred_region
          %s602 = sand.u32 %s122, 1
          %s603 = scalar_lea.sflag [#allocation3], %s602
          %s604 = sand.u32 %s122, 1
          %s605 = smul.addr %s604, 64
          %s606 = scalar_lea.vmem [#allocation2], %s605
          %608 = dma.done %s603, 1024
        $region56: #{tpu_custom_call.1} parent=51 // pred_fallthru
          _
        // Predicated region
        $region57: #{tpu_custom_call.1} parent=51 // pred_check
          %p609 = pneg %p163
        $region58: #{tpu_custom_call.1} parent=51 // pred_check_branch
          %611 = sbr.rel (%p609) target = $region60
        $region59: #{tpu_custom_call.1} parent=51 // pred_region
          %s612 = smul.u32 16, %s25
          %p613 = scmp.lt.s32.totalorder %s612, 31
          %s614 = scalar_select %p613, %s612, 31
          %s615 = smul.addr %s614, 8
          %s616 = scalar_lea.vmem %s5, %s615
        $region60: #{tpu_custom_call.1} parent=51 // pred_fallthru
          _
        // Predicated region
        $region61: #{tpu_custom_call.1} parent=51 // pred_check
          %p617 = pneg %p189
        $region62: #{tpu_custom_call.1} parent=51 // pred_check_branch
          %619 = sbr.rel (%p617) target = $region64
        $region63: #{tpu_custom_call.1} parent=51 // pred_region
          %s620 = sand.u32 %s174, 1
          %s621 = scalar_lea.sflag [#allocation5], %s620
          %s622 = sand.u32 %s174, 1
          %s623 = scalar_lea.vmem [#allocation4], %s622
          %625 = dma.done %s621, 16
        $region64: #{tpu_custom_call.1} parent=51 // pred_fallthru
          _
      $region52: #{tpu_custom_call.1} parent=5 // pred_fallthru
        _
    $region6: #{tpu_custom_call.1} parent=1 // loop_footer
      %s23 = sadd.s32 1, %s19
    $region7: #{tpu_custom_call.1} parent=1 // loop_footer_branch
      %18 = sbr.rel target = $region3
    $region8: #{tpu_custom_call.1} parent=1 // loop_exit
      _
    %626 = vsyncpa [#allocation3], 1
    %s627 = scalar_lea.sflag [#allocation3], 1
    %628 = vsyncpa %s627, 1
    %629 = vsyncpa [#allocation5], 1
    %s630 = scalar_lea.sflag [#allocation5], 1
    %631 = vsyncpa %s630, 1

</llo_original>
